<compile_context>
chip_gen: v6e
topology: v6e:2x2x1
jax: 0.10.0
libtpu: 0.0.40
codegen_flags: <defaults>
</compile_context>

<pallas_src>
import math

import jax
import jax.numpy as jnp
from jax.experimental import pallas as pl
from jax.experimental.pallas import tpu as pltpu


# --------------------------------------------------------------------------- kernel

def _make_kernel(lane_dense_out):
    def kernel(h_ref, g_ref, adj_ref, a_ref, out_ref):
        h = h_ref[...]                             # (Bt, N, D)  f32 or bf16
        g = g_ref[...]                             # (Bt, M, D)  f32 or bf16
        adj = adj_ref[...]                         # (Bt, N, M)  int8 or f32
        adj_f = adj.astype(jnp.float32)

        a1 = a_ref[0:1, :]                         # (1, D) lane-dense row
        a2 = a_ref[1:2, :]                         # (1, D)

        hf = h.astype(jnp.float32)
        gf = g.astype(jnp.float32)

        # e1[b,i] = h[b,i]·a1 , e2[b,j] = g[b,j]·a2  — VPU multiply + lane reduce.
        e1 = jnp.sum(hf * a1[None, :, :], axis=-1, keepdims=True)    # (Bt, N, 1)
        e2 = jnp.sum(gf * a2[None, :, :], axis=-1)                   # (Bt, M)

        e = e1 + e2[:, None, :]                                      # (Bt, N, M)
        e = jnp.where(e > 0, e, 0.2 * e)                             # LeakyReLU(0.2)

        # adj<=0 -> large negative constant, then numerically stable softmax over M.
        att = jnp.where(adj_f > 0, e, jnp.float32(-9.0e15))
        att = jnp.exp(att - jnp.max(att, axis=-1, keepdims=True))
        denom = jnp.sum(att, axis=-1, keepdims=True)                 # (Bt, N, 1) >= 1
        row_sum = jnp.sum(adj_f, axis=-1, keepdims=True)             # (Bt, N, 1)

        # Fused: softmax normalize AND adj-row-sum rescale in a single (N, M) multiply.
        # Exact divide (no approx reciprocal) for parity with the torch module.
        att = att * (row_sum / denom)

        # Only MXU op.  If g arrived as bf16 (feature_dtype set in the wrapper), the
        # matmul runs bf16 x bf16 with f32 accumulation.
        out = jnp.einsum("bnm,bmd->bnd", att.astype(g.dtype), g,
                         preferred_element_type=jnp.float32)          # (Bt, N, D)

        if lane_dense_out:
            # TODO(synk): confirm via bundle dump that this relayout beats the masked
            # vst.msk stores (D < 128) before making it the default.
            out_ref[...] = out.reshape(out_ref.shape).astype(out_ref.dtype)
        else:
            out_ref[...] = out.astype(out_ref.dtype)

    return kernel


# --------------------------------------------------------------------- tile sizing

def _round_up(x, m):
    return ((x + m - 1) // m) * m


def _padded_bytes(shape, dtype):
    """Bytes of one VMEM tile after (sublane, lane) padding."""
    itemsize = jnp.dtype(dtype).itemsize
    sublanes = {4: 8, 2: 16, 1: 32}.get(itemsize, 8)
    dims = list(shape)
    if len(dims) >= 1:
        dims[-1] = _round_up(dims[-1], 128)
    if len(dims) >= 2:
        dims[-2] = _round_up(dims[-2], sublanes)
    n = 1
    for d in dims:
        n *= int(d)
    return n * itemsize


def _step_vmem_bytes(bt, N, M, D, feat_dtype, adj_dtype):
    """Padded VMEM footprint of one grid step (double-buffered IO + intermediates)."""
    io = (_padded_bytes((bt, N, D), feat_dtype)        # input1 block
          + _padded_bytes((bt, M, D), feat_dtype)      # input2 block
          + _padded_bytes((bt, N, M), adj_dtype)       # adj block
          + _padded_bytes((bt, N, D), jnp.float32))    # output block
    io *= 2  # double buffering
    # In-kernel f32 intermediates: ~4 copies of (bt,N,M) (e, att, adj_f, mask/temp),
    # f32 upcasts of the feature blocks, and the f32 accumulator.
    interm = (4 * _padded_bytes((bt, N, M), jnp.float32)
              + _padded_bytes((bt, N, D), jnp.float32)
              + _padded_bytes((bt, M, D), jnp.float32)
              + _padded_bytes((bt, N, D), jnp.float32))
    return io + interm


def _choose_block_b(B, N, M, D, feat_dtype, adj_dtype, *,
                    vmem_budget_bytes=12 << 20, max_block_b=64, min_steps=4):
    """Largest batch tile that fits the padded VMEM budget and keeps >= min_steps
    grid steps (so both v7x TensorCores get work and the pipeline has depth)."""
    cap = max(1, min(max_block_b, B))
    if B >= min_steps:
        cap = min(cap, -(-B // min_steps))          # ceil(B / min_steps)
    bt = cap
    while bt > 1 and _step_vmem_bytes(bt, N, M, D, feat_dtype, adj_dtype) > vmem_budget_bytes:
        bt -= 1
    return bt


# ------------------------------------------------------------------------- wrapper

def attention_inf_level(input1, input2, adj, a1, a2, *,
                        block_b=None,
                        feature_dtype=None,
                        compact_adj=True,
                        lane_dense_out=False,
                        vmem_limit_bytes=32 * 1024 * 1024):
    """Forward pass of Attention_InfLevel.

    feature_dtype: e.g. jnp.bfloat16 to halve feature HBM traffic (v6e/v7x).
    compact_adj:   ship adj as int8 (assumes 0/1 or small-integer adjacency).
    """
    B, N, D = input1.shape
    B2, M, D2 = input2.shape
    assert B2 == B and D2 == D
    assert adj.shape == (B, N, M)
    assert a1.shape == (D, 1) and a2.shape == (D, 1)

    # Pack the two (D, 1) attention vectors as lane-dense rows: (2, D).
    a_rows = jnp.concatenate([a1.T, a2.T], axis=0).astype(jnp.float32)

    if feature_dtype is not None:
        input1 = input1.astype(feature_dtype)       # cast at the HBM boundary
        input2 = input2.astype(feature_dtype)
    if compact_adj:
        adj = adj.astype(jnp.int8)                  # 4x fewer mask bytes over HBM

    if block_b is None:
        block_b = _choose_block_b(B, N, M, D, input1.dtype, adj.dtype)
    block_b = max(1, int(block_b))

    # Pad the batch up to a multiple of block_b (padded rows are fully masked -> 0).
    B_pad = _round_up(B, block_b)
    if B_pad != B:
        pad = ((0, B_pad - B), (0, 0), (0, 0))
        input1 = jnp.pad(input1, pad)
        input2 = jnp.pad(input2, pad)
        adj = jnp.pad(adj, pad)

    if lane_dense_out:
        out_shape = jax.ShapeDtypeStruct((B_pad, N * D), jnp.float32)
        out_spec = pl.BlockSpec((block_b, N * D), lambda b: (b, 0))
    else:
        out_shape = jax.ShapeDtypeStruct((B_pad, N, D), jnp.float32)
        out_spec = pl.BlockSpec((block_b, N, D), lambda b: (b, 0, 0))

    out = pl.pallas_call(
        _make_kernel(lane_dense_out),
        out_shape=out_shape,
        grid_spec=pltpu.PrefetchScalarGridSpec(
            num_scalar_prefetch=0,
            grid=(B_pad // block_b,),
            in_specs=[
                pl.BlockSpec((block_b, N, D), lambda b: (b, 0, 0)),   # input1 (h)
                pl.BlockSpec((block_b, M, D), lambda b: (b, 0, 0)),   # input2 (g)
                pl.BlockSpec((block_b, N, M), lambda b: (b, 0, 0)),   # adj (int8/f32)
                pl.BlockSpec((2, D), lambda b: (0, 0)),               # packed a1/a2
            ],
            out_specs=out_spec,
        ),
        compiler_params=pltpu.CompilerParams(
            dimension_semantics=("parallel",),
            vmem_limit_bytes=vmem_limit_bytes),
    )(input1, input2, adj, a_rows)

    if lane_dense_out:
        out = out.reshape(B_pad, N, D)
    return out[:B]


# ----------------------------------------------------------------------- reference

def reference(input1, input2, adj, a1, a2):
    """Pure-JAX reference mirroring the PyTorch forward."""
    e1 = input1 @ a1                               # (B, N, 1)
    e2 = jnp.swapaxes(input2 @ a2, 1, 2)           # (B, 1, M)
    e = e1 + e2
    e = jnp.where(e > 0, e, 0.2 * e)
    att = jnp.where(adj > 0, e, -9.0e15)
    att = jax.nn.softmax(att, axis=2)
    att = jnp.where(jnp.isnan(att), 0.0, att)
    adj_ = jnp.sum(adj, axis=2, keepdims=True)     # (B, N, 1) broadcast over M
    att = att * adj_
    return att @ input2


# ----------------------------------------------------------------------------- main

if __name__ == "__main__":
    key = jax.random.PRNGKey(0)
    k1, k2, k3, ka1, ka2 = jax.random.split(key, 5)

    bsz = 2
    B = bsz * 4         # module convention: (bsz*4, n_nodes, dim_features)
    N = 8               # n1_nodes
    M = 16              # n2_nodes
    D = 32              # dim_features

    input1 = jax.random.normal(k1, (B, N, D), dtype=jnp.float32)
    input2 = jax.random.normal(k2, (B, M, D), dtype=jnp.float32)
    adj = (jax.random.uniform(k3, (B, N, M)) > 0.5).astype(jnp.float32)
    adj = adj.at[0, 0, :].set(0.0)   # exercise the fully-masked-row path

    # xavier_normal_ with gain=1.414 on shape (D, 1): std = gain * sqrt(2/(fan_in+fan_out))
    std = 1.414 * math.sqrt(2.0 / (D + 1))
    a1 = std * jax.random.normal(ka1, (D, 1), dtype=jnp.float32)
    a2 = std * jax.random.normal(ka2, (D, 1), dtype=jnp.float32)

    ref = reference(input1, input2, adj, a1, a2)

    # Default path: f32 features + int8 adj + exact divide.
    out = attention_inf_level(input1, input2, adj, a1, a2)
    out = jax.block_until_ready(out)
    assert out.shape == (B, N, D)
    assert jnp.allclose(out, ref, atol=1e-4, rtol=1e-4), "f32 path mismatch vs reference"

    # bf16-feature path (HBM-byte saver for v6e/v7x): compile/run coverage, loose check.
    out_bf16 = attention_inf_level(input1, input2, adj, a1, a2,
                                   feature_dtype=jnp.bfloat16)
    out_bf16 = jax.block_until_ready(out_bf16)
    assert out_bf16.shape == (B, N, D)
    assert bool(jnp.all(jnp.isfinite(out_bf16)))
    assert jnp.allclose(out_bf16, ref, atol=0.25, rtol=0.25), "bf16 path grossly off"

    print("KERNEL_OK")
</pallas_src>

<mosaic_0001>
module attributes {stable_mosaic.version = 11 : i64} {
  func.func @kernel(%arg0: i32, %arg1: memref<2x8x32xf32, #tpu.memory_space<vmem>>, %arg2: memref<2x16x32xf32, #tpu.memory_space<vmem>>, %arg3: memref<2x8x16xi8, #tpu.memory_space<vmem>>, %arg4: memref<2x32xf32, #tpu.memory_space<vmem>>, %arg5: memref<2x8x32xf32, #tpu.memory_space<vmem>>) attributes {dimension_semantics = [#tpu.dimension_semantics<parallel>], iteration_bounds = array<i64: 4>, scalar_prefetch = 0 : i64, scratch_operands = 0 : i64, tpu.core_type = #tpu.core_type<tc>, window_params = [{transform_indices = @transform_0, window_bounds = array<i64: 2, 8, 32>}, {transform_indices = @transform_1, window_bounds = array<i64: 2, 16, 32>}, {transform_indices = @transform_2, window_bounds = array<i64: 2, 8, 16>}, {pipeline_mode = #tpu.pipeline_mode<synchronous>, transform_indices = @transform_3, window_bounds = array<i64: 2, 32>}, {transform_indices = @transform_4, window_bounds = array<i64: 2, 8, 32>}]} {
    %c0 = arith.constant 0 : index
    %c0_0 = arith.constant 0 : index
    %c0_1 = arith.constant 0 : index
    %0 = vector.load %arg1[%c0, %c0_0, %c0_1] : memref<2x8x32xf32, #tpu.memory_space<vmem>>, vector<2x8x32xf32>
    %c0_2 = arith.constant 0 : index
    %c0_3 = arith.constant 0 : index
    %c0_4 = arith.constant 0 : index
    %1 = vector.load %arg2[%c0_2, %c0_3, %c0_4] : memref<2x16x32xf32, #tpu.memory_space<vmem>>, vector<2x16x32xf32>
    %c0_5 = arith.constant 0 : index
    %c0_6 = arith.constant 0 : index
    %c0_7 = arith.constant 0 : index
    %2 = vector.load %arg3[%c0_5, %c0_6, %c0_7] : memref<2x8x16xi8, #tpu.memory_space<vmem>>, vector<2x8x16xi8>
    %3 = arith.sitofp %2 : vector<2x8x16xi8> to vector<2x8x16xf32>
    %c0_8 = arith.constant 0 : index
    %c0_9 = arith.constant 0 : index
    %4 = vector.load %arg4[%c0_8, %c0_9] : memref<2x32xf32, #tpu.memory_space<vmem>>, vector<1x32xf32>
    %c1 = arith.constant 1 : index
    %c0_10 = arith.constant 0 : index
    %5 = vector.load %arg4[%c1, %c0_10] : memref<2x32xf32, #tpu.memory_space<vmem>>, vector<1x32xf32>
    %6 = vector.shape_cast %4 : vector<1x32xf32> to vector<1x1x32xf32>
    %7 = vector.broadcast %6 : vector<1x1x32xf32> to vector<2x8x32xf32>
    %8 = arith.mulf %0, %7 : vector<2x8x32xf32>
    %cst = arith.constant dense<0.000000e+00> : vector<2x8xf32>
    %9 = vector.multi_reduction <add>, %8, %cst [2] : vector<2x8x32xf32> to vector<2x8xf32>
    %10 = vector.shape_cast %9 : vector<2x8xf32> to vector<2x8x1xf32>
    %11 = vector.shape_cast %5 : vector<1x32xf32> to vector<1x1x32xf32>
    %12 = vector.broadcast %11 : vector<1x1x32xf32> to vector<2x16x32xf32>
    %13 = arith.mulf %1, %12 : vector<2x16x32xf32>
    %cst_11 = arith.constant dense<0.000000e+00> : vector<2x16xf32>
    %14 = vector.multi_reduction <add>, %13, %cst_11 [2] : vector<2x16x32xf32> to vector<2x16xf32>
    %15 = vector.shape_cast %14 : vector<2x16xf32> to vector<2x1x16xf32>
    %16 = vector.broadcast %10 : vector<2x8x1xf32> to vector<2x8x16xf32>
    %17 = vector.broadcast %15 : vector<2x1x16xf32> to vector<2x8x16xf32>
    %18 = arith.addf %16, %17 : vector<2x8x16xf32>
    %cst_12 = arith.constant 0.000000e+00 : f32
    %19 = vector.broadcast %cst_12 : f32 to vector<2x8x16xf32>
    %20 = arith.cmpf ogt, %18, %19 : vector<2x8x16xf32>
    %cst_13 = arith.constant 2.000000e-01 : f32
    %21 = vector.broadcast %cst_13 : f32 to vector<2x8x16xf32>
    %22 = arith.mulf %21, %18 : vector<2x8x16xf32>
    %23 = arith.select %20, %18, %22 : vector<2x8x16xi1>, vector<2x8x16xf32>
    %cst_14 = arith.constant 0.000000e+00 : f32
    %24 = vector.broadcast %cst_14 : f32 to vector<2x8x16xf32>
    %25 = arith.cmpf ogt, %3, %24 : vector<2x8x16xf32>
    %cst_15 = arith.constant -9.000000e+15 : f32
    %26 = vector.broadcast %cst_15 : f32 to vector<2x8x16xf32>
    %27 = arith.select %25, %23, %26 : vector<2x8x16xi1>, vector<2x8x16xf32>
    %cst_16 = arith.constant dense<0xFF800000> : vector<2x8xf32>
    %28 = vector.multi_reduction <maximumf>, %27, %cst_16 [2] : vector<2x8x16xf32> to vector<2x8xf32>
    %29 = vector.shape_cast %28 : vector<2x8xf32> to vector<2x8x1xf32>
    %30 = vector.broadcast %29 : vector<2x8x1xf32> to vector<2x8x16xf32>
    %31 = arith.subf %27, %30 : vector<2x8x16xf32>
    %32 = math.exp %31 : vector<2x8x16xf32>
    %cst_17 = arith.constant dense<0.000000e+00> : vector<2x8xf32>
    %33 = vector.multi_reduction <add>, %32, %cst_17 [2] : vector<2x8x16xf32> to vector<2x8xf32>
    %34 = vector.shape_cast %33 : vector<2x8xf32> to vector<2x8x1xf32>
    %cst_18 = arith.constant dense<0.000000e+00> : vector<2x8xf32>
    %35 = vector.multi_reduction <add>, %3, %cst_18 [2] : vector<2x8x16xf32> to vector<2x8xf32>
    %36 = vector.shape_cast %35 : vector<2x8xf32> to vector<2x8x1xf32>
    %37 = arith.divf %36, %34 : vector<2x8x1xf32>
    %38 = vector.broadcast %37 : vector<2x8x1xf32> to vector<2x8x16xf32>
    %39 = arith.mulf %32, %38 : vector<2x8x16xf32>
    "tpu.trace_start"() <{level = 10 : i32, message = "bnm,bmd->bnd"}> : () -> ()
    %cst_19 = arith.constant dense<0.000000e+00> : vector<2x8x32xf32>
    %40 = tpu.matmul %39, %1, %cst_19 {dimension_numbers = #tpu.dot_dimension_numbers<[2], [1], [1], [2], [0, 0, 0, 1, 1, 2], [0], [0]>} : vector<2x8x16xf32>, vector<2x16x32xf32>, vector<2x8x32xf32> -> vector<2x8x32xf32>
    "tpu.trace_stop"() : () -> ()
    %c0_20 = arith.constant 0 : index
    %c0_21 = arith.constant 0 : index
    %c0_22 = arith.constant 0 : index
    %41 = vector.load %arg5[%c0_20, %c0_21, %c0_22] : memref<2x8x32xf32, #tpu.memory_space<vmem>>, vector<2x8x32xf32>
    tpu.vector_store %arg5[%c0_20, %c0_21, %c0_22], %40 {strides = array<i32>} : memref<2x8x32xf32, #tpu.memory_space<vmem>>, vector<2x8x32xf32>,
    return
  }
  func.func @transform_0(%arg0: i32) -> (i32, i32, i32) {
    %c0_i32 = arith.constant 0 : i32
    %c0_i32_0 = arith.constant 0 : i32
    %c0_i32_1 = arith.constant 0 : i32
    return %arg0, %c0_i32, %c0_i32_0 : i32, i32, i32
  }
  func.func @transform_1(%arg0: i32) -> (i32, i32, i32) {
    %c0_i32 = arith.constant 0 : i32
    %c0_i32_0 = arith.constant 0 : i32
    %c0_i32_1 = arith.constant 0 : i32
    return %arg0, %c0_i32, %c0_i32_0 : i32, i32, i32
  }
  func.func @transform_2(%arg0: i32) -> (i32, i32, i32) {
    %c0_i32 = arith.constant 0 : i32
    %c0_i32_0 = arith.constant 0 : i32
    %c0_i32_1 = arith.constant 0 : i32
    return %arg0, %c0_i32, %c0_i32_0 : i32, i32, i32
  }
  func.func @transform_3(%arg0: i32) -> (i32, i32) {
    %c0_i32 = arith.constant 0 : i32
    %c0_i32_0 = arith.constant 0 : i32
    %c0_i32_1 = arith.constant 0 : i32
    return %c0_i32, %c0_i32_0 : i32, i32
  }
  func.func @transform_4(%arg0: i32) -> (i32, i32, i32) {
    %c0_i32 = arith.constant 0 : i32
    %c0_i32_0 = arith.constant 0 : i32
    %c0_i32_1 = arith.constant 0 : i32
    return %arg0, %c0_i32, %c0_i32_0 : i32, i32, i32
  }
}

</mosaic_0001>

<llo_original>
// kernel: tpu_custom_call.1
$region0: #{tpu_custom_call.1}
  #allocation0 [shape = 'u32[]', space=smem, size = 0x4, offset = 0x4, fixed_abs, tag = 'smem constant byte address 0x4 - core index']
  #allocation1 [shape = 'u32[144,128]{1,0:T(1,128)}', space=vmem, size = 0x12000, scoped, tag = 'internal scratch']
  %s0 = inlined_call_operand.hbm [shape: f32[8,8,32], index: 0, kind: input, shape index: {}]
  %s1 = inlined_call_operand.hbm [shape: f32[8,16,32], index: 1, kind: input, shape index: {}]
  %s2 = inlined_call_operand.hbm [shape: s8[8,8,16], index: 2, kind: input, shape index: {}]
  %s3 = inlined_call_operand.vmem [shape: f32[2,32], index: 3, kind: input, shape index: {}]
  %s4 = inlined_call_operand.hbm [shape: f32[8,8,32], index: 4, kind: output, shape index: {}]
  %s5 = sld [smem:[#allocation0]]
  $region61: #{tpu_custom_call.1} parent=0
    _
  %s7 = ssub.s32 1, %s5
  %s8 = scalar_select 0, %s7, %s5
  $region1: #{tpu_custom_call.1} parent=0
    #allocation2 [shape = 'u8[16384]{0}', space=vmem, size = 0x4000, scoped, tag = 'input window, operand 0']
    #allocation3 [shape = 's32[2]{0}', space=sflag, size = 0x8, scoped, tag = 'scoped memory for tpu_custom_call.1']
    #allocation4 [shape = 's32[2]{0}', space=sflag, size = 0x8, scoped, tag = 'scoped memory for tpu_custom_call.1']
    #allocation5 [shape = 'u8[32768]{0}', space=vmem, size = 0x8000, scoped, tag = 'input window, operand 1']
    #allocation6 [shape = 's32[2]{0}', space=sflag, size = 0x8, scoped, tag = 'scoped memory for tpu_custom_call.1']
    #allocation7 [shape = 'u8[4096]{0}', space=vmem, size = 0x1000, scoped, tag = 'input window, operand 2']
    #allocation8 [shape = 'u8[16384]{0}', space=vmem, size = 0x4000, scoped, tag = 'output window, operand 0']
    %9 = vsyncpa [#allocation3], 0
    %s10 = scalar_lea.sflag [#allocation3], 1
    %11 = vsyncpa %s10, 0
    %12 = vsyncpa [#allocation6], 0
    %s13 = scalar_lea.sflag [#allocation6], 1
    %14 = vsyncpa %s13, 0
    %15 = vsyncpa [#allocation4], 0
    %s16 = scalar_lea.sflag [#allocation4], 1
    %17 = vsyncpa %s16, 0
    loop: start=0, step=1, limit=6
    $region2: #{tpu_custom_call.1} parent=1 // loop_pre_header
      _
    $region3: #{tpu_custom_call.1} parent=1 // loop_header
      %s19 = sphi 0, %s23
      %p20 = scmp.ge.s32.totalorder %s19, 6
      %s29 = sphi 0, %s31
      %s32 = sphi 0, %s29
      %s33 = sphi 0, %s32
      %s49 = sphi 0, %s33
      %s55 = sphi 0, %s57
      %s58 = sphi 0, %s55
      %s59 = sphi 0, %s58
      %s75 = sphi 0, %s59
      %s81 = sphi 0, %s83
      %s84 = sphi 0, %s81
      %s85 = sphi 0, %s84
      %s101 = sphi 0, %s85
      %s105 = sphi 0, %s105
      %s107 = sphi 0, %s105
      %s108 = sphi 0, %s107
      %s122 = sphi 0, %s108
      %s128 = sphi 0, %s130
      %s131 = sphi 0, %s128
      %s132 = sphi 0, %s131
      %s148 = sphi 0, %s132
    $region4: #{tpu_custom_call.1} parent=1 // loop_header_branch
      %22 = sbr.rel (%p20) target = $region8
    $region5: #{tpu_custom_call.1} parent=1 // loop_body
      %s24 = ssub.s32 %s19, 1
      %s25 = ssub.s32 %s19, 2
      %s26 = sadd.s32 %s19, 1
      %s27 = ssub.s32 %s19, %s26
      %p28 = scmp.eq.s32.totalorder %s27, 0
      %s30 = sadd.s32 %s29, 1
      %s31 = scalar_select %p28, %s29, %s30
      %p34 = pneg %p28
      %p35 = scmp.eq.s32.totalorder %s19, 3
      %p36 = por %p34, %p35
      %p37 = scmp.ne.s32.totalorder %s29, %s32
      %p38 = scmp.eq.s32.totalorder %s19, 0
      %p39 = por %p37, %p38
      %p40 = scmp.ne.s32.totalorder %s29, %s32
      %p41 = scmp.eq.s32.totalorder %s24, 3
      %p42 = por %p40, %p41
      %p43 = scmp.ne.s32.totalorder %s32, %s33
      %p44 = scmp.eq.s32.totalorder %s24, 0
      %p45 = por %p43, %p44
      %p46 = scmp.ne.s32.totalorder %s32, %s33
      %p47 = scmp.eq.s32.totalorder %s25, 3
      %p48 = por %p46, %p47
      %p50 = scmp.ne.s32.totalorder %s33, %s49
      %p51 = scmp.eq.s32.totalorder %s25, 0
      %p52 = por %p50, %p51
      %s53 = ssub.s32 %s19, %s26
      %p54 = scmp.eq.s32.totalorder %s53, 0
      %s56 = sadd.s32 %s55, 1
      %s57 = scalar_select %p54, %s55, %s56
      %p60 = pneg %p54
      %p61 = scmp.eq.s32.totalorder %s19, 3
      %p62 = por %p60, %p61
      %p63 = scmp.ne.s32.totalorder %s55, %s58
      %p64 = scmp.eq.s32.totalorder %s19, 0
      %p65 = por %p63, %p64
      %p66 = scmp.ne.s32.totalorder %s55, %s58
      %p67 = scmp.eq.s32.totalorder %s24, 3
      %p68 = por %p66, %p67
      %p69 = scmp.ne.s32.totalorder %s58, %s59
      %p70 = scmp.eq.s32.totalorder %s24, 0
      %p71 = por %p69, %p70
      %p72 = scmp.ne.s32.totalorder %s58, %s59
      %p73 = scmp.eq.s32.totalorder %s25, 3
      %p74 = por %p72, %p73
      %p76 = scmp.ne.s32.totalorder %s59, %s75
      %p77 = scmp.eq.s32.totalorder %s25, 0
      %p78 = por %p76, %p77
      %s79 = ssub.s32 %s19, %s26
      %p80 = scmp.eq.s32.totalorder %s79, 0
      %s82 = sadd.s32 %s81, 1
      %s83 = scalar_select %p80, %s81, %s82
      %p86 = pneg %p80
      %p87 = scmp.eq.s32.totalorder %s19, 3
      %p88 = por %p86, %p87
      %p89 = scmp.ne.s32.totalorder %s81, %s84
      %p90 = scmp.eq.s32.totalorder %s19, 0
      %p91 = por %p89, %p90
      %p92 = scmp.ne.s32.totalorder %s81, %s84
      %p93 = scmp.eq.s32.totalorder %s24, 3
      %p94 = por %p92, %p93
      %p95 = scmp.ne.s32.totalorder %s84, %s85
      %p96 = scmp.eq.s32.totalorder %s24, 0
      %p97 = por %p95, %p96
      %p98 = scmp.ne.s32.totalorder %s84, %s85
      %p99 = scmp.eq.s32.totalorder %s25, 3
      %p100 = por %p98, %p99
      %p102 = scmp.ne.s32.totalorder %s85, %s101
      %p103 = scmp.eq.s32.totalorder %s25, 0
      %p104 = por %p102, %p103
      %s106 = sadd.s32 %s105, 1
      %p109 = scmp.eq.s32.totalorder %s19, 3
      %p110 = scmp.ne.s32.totalorder %s105, %s107
      %p111 = scmp.eq.s32.totalorder %s19, 0
      %p112 = por %p110, %p111
      %p113 = scmp.ne.s32.totalorder %s105, %s107
      %p114 = scmp.eq.s32.totalorder %s24, 3
      %p115 = por %p113, %p114
      %p116 = scmp.ne.s32.totalorder %s107, %s108
      %p117 = scmp.eq.s32.totalorder %s24, 0
      %p118 = por %p116, %p117
      %p119 = scmp.ne.s32.totalorder %s107, %s108
      %p120 = scmp.eq.s32.totalorder %s25, 3
      %p121 = por %p119, %p120
      %p123 = scmp.ne.s32.totalorder %s108, %s122
      %p124 = scmp.eq.s32.totalorder %s25, 0
      %p125 = por %p123, %p124
      %s126 = ssub.s32 %s19, %s26
      %p127 = scmp.eq.s32.totalorder %s126, 0
      %s129 = sadd.s32 %s128, 1
      %s130 = scalar_select %p127, %s128, %s129
      %p133 = pneg %p127
      %p134 = scmp.eq.s32.totalorder %s19, 3
      %p135 = por %p133, %p134
      %p136 = scmp.ne.s32.totalorder %s128, %s131
      %p137 = scmp.eq.s32.totalorder %s19, 0
      %p138 = por %p136, %p137
      %p139 = scmp.ne.s32.totalorder %s128, %s131
      %p140 = scmp.eq.s32.totalorder %s24, 3
      %p141 = por %p139, %p140
      %p142 = scmp.ne.s32.totalorder %s131, %s132
      %p143 = scmp.eq.s32.totalorder %s24, 0
      %p144 = por %p142, %p143
      %p145 = scmp.ne.s32.totalorder %s131, %s132
      %p146 = scmp.eq.s32.totalorder %s25, 3
      %p147 = por %p145, %p146
      %p149 = scmp.ne.s32.totalorder %s132, %s148
      %p150 = scmp.eq.s32.totalorder %s25, 0
      %p151 = por %p149, %p150
      %p152 = scmp.le.s32.totalorder 1, %s19
      %p153 = scmp.lt.s32.totalorder %s19, 5
      %p154 = pnand %p152, %p153
      %p155 = pneg %p154
      // Predicated region
      $region9: #{tpu_custom_call.1} parent=5 // pred_check
        _
      $region10: #{tpu_custom_call.1} parent=5 // pred_check_branch
        %157 = sbr.rel (%p154) target = $region12
      $region11: #{tpu_custom_call.1} parent=5 // pred_region
        %s158 = ssub.s32 %s19, 1
        // Predicated region
        $region13: #{tpu_custom_call.1} parent=11 // pred_check
          %p159 = pneg %p118
        $region14: #{tpu_custom_call.1} parent=11 // pred_check_branch
          %161 = sbr.rel (%p159) target = $region16
        $region15: #{tpu_custom_call.1} parent=11 // pred_region
          _
        $region16: #{tpu_custom_call.1} parent=11 // pred_fallthru
          _
      $region12: #{tpu_custom_call.1} parent=5 // pred_fallthru
        _
      %p162 = scmp.lt.s32.totalorder %s19, 4
      // Predicated region
      $region17: #{tpu_custom_call.1} parent=5 // pred_check
        %p163 = pneg %p162
      $region18: #{tpu_custom_call.1} parent=5 // pred_check_branch
        %165 = sbr.rel (%p163) target = $region20
      $region19: #{tpu_custom_call.1} parent=5 // pred_region
        // Predicated region
        $region21: #{tpu_custom_call.1} parent=19 // pred_check
          %p166 = pneg %p39
        $region22: #{tpu_custom_call.1} parent=19 // pred_check_branch
          %168 = sbr.rel (%p166) target = $region24
        $region23: #{tpu_custom_call.1} parent=19 // pred_region
          %s169 = sand.u32 %s29, 1
          %s170 = scalar_lea.sflag [#allocation3], %s169
          %s171 = sand.u32 %s29, 1
          %s172 = smul.addr %s171, 16
          %s173 = scalar_lea.vmem [#allocation2], %s172
          %s174 = smul.u32 2, %s19
          %s176 = ssub.s32 256, 256
          %177 = vsyncadd %s170, %s176
          %s178 = smul.addr %s174, 128
          %s179 = scalar_lea.hbm %s0, %s178
          %s180 = sshll.u32 %s173, 4
          %s181 = int_to_ptr.vmem [resolvable:$true] %s180
          %186 = dma.hbm_to_vmem [thread:$0]  %s179, 256, %s181, %s170, 128, 128, 8
        $region24: #{tpu_custom_call.1} parent=19 // pred_fallthru
          _
        // Predicated region
        $region25: #{tpu_custom_call.1} parent=19 // pred_check
          %p187 = pneg %p65
        $region26: #{tpu_custom_call.1} parent=19 // pred_check_branch
          %189 = sbr.rel (%p187) target = $region28
        $region27: #{tpu_custom_call.1} parent=19 // pred_region
          %s190 = sand.u32 %s19, 1
          %s191 = scalar_lea.sflag [#allocation6], %s190
          %s192 = sand.u32 %s55, 1
          %s193 = smul.addr %s192, 32
          %s194 = scalar_lea.vmem [#allocation5], %s193
          %s195 = smul.u32 2, %s19
          %s197 = ssub.s32 512, 512
          %198 = vsyncadd %s191, %s197
          %s199 = smul.addr %s195, 2
          %s200 = smul.addr %s199, 128
          %s201 = scalar_lea.hbm %s1, %s200
          %s202 = sshll.u32 %s194, 4
          %s203 = int_to_ptr.vmem [resolvable:$true] %s202
          %208 = dma.hbm_to_vmem [thread:$0]  %s201, 512, %s203, %s191, 128, 128, 8
        $region28: #{tpu_custom_call.1} parent=19 // pred_fallthru
          _
        // Predicated region
        $region29: #{tpu_custom_call.1} parent=19 // pred_check
          %p209 = pneg %p91
        $region30: #{tpu_custom_call.1} parent=19 // pred_check_branch
          %211 = sbr.rel (%p209) target = $region32
        $region31: #{tpu_custom_call.1} parent=19 // pred_region
          %s212 = sand.u32 %s19, 1
          %s213 = scalar_lea.sflag [#allocation6], %s212
          %s214 = sand.u32 %s81, 1
          %s215 = smul.addr %s214, 4
          %s216 = scalar_lea.vmem [#allocation7], %s215
          %s217 = smul.u32 2, %s19
          %s219 = ssub.s32 64, 64
          %220 = vsyncadd %s213, %s219
          %s221 = smul.addr %s217, 32
          %s222 = scalar_lea.hbm %s2, %s221
          %s223 = sshll.u32 %s216, 4
          %s224 = int_to_ptr.vmem [resolvable:$true] %s223
          %229 = dma.hbm_to_vmem [thread:$0]  %s222, 64, %s224, %s213, 32, 32, 2
        $region32: #{tpu_custom_call.1} parent=19 // pred_fallthru
          _
      $region20: #{tpu_custom_call.1} parent=5 // pred_fallthru
        _
      %p230 = scmp.le.s32.totalorder 1, %s19
      %p231 = scmp.lt.s32.totalorder %s19, 5
      %p232 = pnand %p230, %p231
      %p233 = pneg %p232
      // Predicated region
      $region33: #{tpu_custom_call.1} parent=5 // pred_check
        _
      $region34: #{tpu_custom_call.1} parent=5 // pred_check_branch
        %235 = sbr.rel (%p232) target = $region36
      $region35: #{tpu_custom_call.1} parent=5 // pred_region
        %s236 = ssub.s32 %s19, 1
        %s237 = sand.u32 %s32, 1
        %s238 = scalar_lea.sflag [#allocation3], %s237
        %s239 = sand.u32 %s32, 1
        %s240 = smul.addr %s239, 16
        %s241 = scalar_lea.vmem [#allocation2], %s240
        // Predicated region
        $region37: #{tpu_custom_call.1} parent=35 // pred_check
          %p242 = pneg %p45
        $region38: #{tpu_custom_call.1} parent=35 // pred_check_branch
          %244 = sbr.rel (%p242) target = $region40
        $region39: #{tpu_custom_call.1} parent=35 // pred_region
          %245 = dma.done %s238, 256
        $region40: #{tpu_custom_call.1} parent=35 // pred_fallthru
          _
        %s246 = sand.u32 %s24, 1
        %s247 = scalar_lea.sflag [#allocation6], %s246
        %s248 = sand.u32 %s58, 1
        %s249 = smul.addr %s248, 32
        %s250 = scalar_lea.vmem [#allocation5], %s249
        // Predicated region
        $region41: #{tpu_custom_call.1} parent=35 // pred_check
          %p251 = pneg %p71
        $region42: #{tpu_custom_call.1} parent=35 // pred_check_branch
          %253 = sbr.rel (%p251) target = $region44
        $region43: #{tpu_custom_call.1} parent=35 // pred_region
          %254 = dma.done %s247, 512
        $region44: #{tpu_custom_call.1} parent=35 // pred_fallthru
          _
        %s255 = sand.u32 %s24, 1
        %s256 = scalar_lea.sflag [#allocation6], %s255
        %s257 = sand.u32 %s84, 1
        %s258 = smul.addr %s257, 4
        %s259 = scalar_lea.vmem [#allocation7], %s258
        // Predicated region
        $region45: #{tpu_custom_call.1} parent=35 // pred_check
          %p260 = pneg %p97
        $region46: #{tpu_custom_call.1} parent=35 // pred_check_branch
          %262 = sbr.rel (%p260) target = $region48
        $region47: #{tpu_custom_call.1} parent=35 // pred_region
          %263 = dma.done %s256, 64
        $region48: #{tpu_custom_call.1} parent=35 // pred_fallthru
          _
        %s264 = sand.u32 %s32, 1
        %s265 = scalar_lea.sflag [#allocation3], %s264
        %s266 = sand.u32 %s32, 1
        %s267 = smul.addr %s266, 16
        %s268 = scalar_lea.vmem [#allocation2], %s267
        %p269 = pneg %p45
        %p270 = pneg %p42
        %s271 = sand.u32 %s24, 1
        %s272 = scalar_lea.sflag [#allocation6], %s271
        %s273 = sand.u32 %s58, 1
        %s274 = smul.addr %s273, 32
        %s275 = scalar_lea.vmem [#allocation5], %s274
        %p276 = pneg %p71
        %p277 = pneg %p68
        %s278 = sand.u32 %s24, 1
        %s279 = scalar_lea.sflag [#allocation6], %s278
        %s280 = sand.u32 %s84, 1
        %s281 = smul.addr %s280, 4
        %s282 = scalar_lea.vmem [#allocation7], %s281
        %p283 = pneg %p97
        %p284 = pneg %p94
        %p285 = pneg %p118
        %p286 = pneg %p115
        %p287 = pneg %p144
        %p288 = pneg %p141
        %s289 = sand.u32 %s131, 1
        %s290 = scalar_lea.sflag [#allocation4], %s289
        %s291 = sand.u32 %s131, 1
        %s292 = smul.addr %s291, 16
        %s293 = scalar_lea.vmem [#allocation8], %s292
        %s294 = smul.u32 2, %s24
        %s295 = smul.u32 2, %s24
        %s296 = smul.u32 2, %s24
        %s297 = smul.u32 2, %s24
        %v298 = vld [vmem:[%s241] sm:$0xff]
        %v299 = vld [vmem:[%s241 + $0x8] sm:$0xff]
        %v300 = vld [vmem:[%s250] sm:$0xff]
        %v301 = vld [vmem:[%s250 + $0x8] sm:$0xff]
        %v302 = vld [vmem:[%s250 + $0x10] sm:$0xff]
        %v303 = vld [vmem:[%s250 + $0x18] sm:$0xff]
        %v304 = vld [vmem:[%s259] sm:$0x3]
        %v305 = vld [vmem:[%s259 + $0x2] sm:$0x3]
        %v306 = vunpack.c.0.s8 %v304
        %v307 = vunpack.c.0.s8 %v305
        %v308 = vcvt.s32.f32 %v306
        %v309 = vcvt.s32.f32 %v307
        %v310 = vld [vmem:[%s3] sm:$0x1]
        %v311 = vld [vmem:[%s3 + $0x1] sm:$0x1]
        %v312 = vlaneseq
        %v313 = vshrl.u32 %v312, 7
        %v314 = vsub.s32 0, %v313
        %v315 = vrot.slane %v310, %v314
        %v316 = vmul.f32 %v298, %v315
        %v317 = vmul.f32 %v299, %v315
        %vm318 = vcmask 261120
        %v319 = vsel %vm318, %v316, 0.0
        %320 = vadd.xlane.f32.xlu0 %v319
        %v321 = vpop.xlane.xlu0 %320
        %v322 = vsel %vm318, %v317, 0.0
        %323 = vadd.xlane.f32.xlu0 %v322
        %v324 = vpop.xlane.xlu0 %323
        %v325 = vlaneseq
        %v326 = vshrl.u32 %v325, 7
        %v327 = vsub.s32 0, %v326
        %v328 = vrot.slane %v311, %v327
        %v329 = vmul.f32 %v300, %v328
        %v330 = vmul.f32 %v301, %v328
        %v331 = vmul.f32 %v302, %v328
        %v332 = vmul.f32 %v303, %v328
        %v333 = vsel %vm318, %v329, 0.0
        %334 = vadd.xlane.f32.xlu0 %v333
        %v335 = vpop.xlane.xlu0 %334
        %v336 = vsel %vm318, %v330, 0.0
        %337 = vadd.xlane.f32.xlu0 %v336
        %v338 = vpop.xlane.xlu0 %337
        %v339 = vsel %vm318, %v331, 0.0
        %340 = vadd.xlane.f32.xlu0 %v339
        %v341 = vpop.xlane.xlu0 %340
        %v342 = vsel %vm318, %v332, 0.0
        %343 = vadd.xlane.f32.xlu0 %v342
        %v344 = vpop.xlane.xlu0 %343
        %v349 = vlaneseq
        %v350 = vand.u32 %v349, 127
        %v351 = vlaneseq
        %v352 = vshrl.u32 %v351, 7
        %v353 = vsub.s32 %v350, %v352
        %v354 = vrot.slane %v335, %v353
        %v355 = vadd.s32 %v350, 4294967288
        %v356 = vlaneseq
        %v357 = vshrl.u32 %v356, 7
        %v358 = vsub.s32 %v355, %v357
        %v359 = vrot.slane %v338, %v358
        %vm360 = vcmask 130112
        %v361 = vsel %vm360, %v359, %v354
        %v362 = vlaneseq
        %v363 = vshrl.u32 %v362, 7
        %v364 = vsub.s32 %v350, %v363
        %v365 = vrot.slane %v341, %v364
        %v366 = vlaneseq
        %v367 = vshrl.u32 %v366, 7
        %v368 = vsub.s32 %v355, %v367
        %v369 = vrot.slane %v344, %v368
        %v370 = vsel %vm360, %v369, %v365
        %vm371 = vcmask 1042434
        %v372 = vsel %vm371, %v361, %v361
        %vm373 = vcmask 1043459
        %v374 = vsel %vm373, %v361, %v372
        %vm375 = vcmask 1044484
        %v376 = vsel %vm375, %v361, %v374
        %vm377 = vcmask 1045509
        %v378 = vsel %vm377, %v361, %v376
        %vm379 = vcmask 1046534
        %v380 = vsel %vm379, %v361, %v378
        %vm381 = vcmask 1047559
        %v382 = vsel %vm381, %v361, %v380
        %v383 = vsel %vm371, %v370, %v370
        %v384 = vsel %vm373, %v370, %v383
        %v385 = vsel %vm375, %v370, %v384
        %v386 = vsel %vm377, %v370, %v385
        %v387 = vsel %vm379, %v370, %v386
        %v388 = vsel %vm381, %v370, %v387
        %v391 = vadd.f32 %v321, %v382
        %v392 = vadd.f32 %v324, %v388
        %vm393 = vcmp.gt.f32.partialorder %v391, 0.0
        %vm394 = vcmp.gt.f32.partialorder %v392, 0.0
        %v395 = vmul.f32 %v391, 0.2
        %v396 = vmul.f32 %v392, 0.2
        %v397 = vsel %vm393, %v391, %v395
        %v398 = vsel %vm394, %v392, %v396
        %vm399 = vcmp.gt.f32.partialorder %v308, 0.0
        %vm400 = vcmp.gt.f32.partialorder %v309, 0.0
        %v401 = vsel %vm399, %v397, -9e+15
        %v402 = vsel %vm400, %v398, -9e+15
        %vm403 = vcmask 130048
        %v404 = vsel %vm403, %v401, -inf
        %405 = vmax.xlane.f32.xlu0 %v404
        %v406 = vpop.xlane.xlu0 %405
        %v407 = vsel %vm403, %v402, -inf
        %408 = vmax.xlane.f32.xlu0 %v407
        %v409 = vpop.xlane.xlu0 %408
        %v410 = vsub.f32 %v401, %v406
        %v411 = vsub.f32 %v402, %v409
        %v412 = vmul.f32 %v410, 1.442695
        %v413 = vpow.pop %v412
        %v414 = vmul.f32 %v411, 1.442695
        %v415 = vpow.pop %v414
        %v416 = vsel %vm403, %v413, 0.0
        %417 = vadd.xlane.f32.xlu0 %v416
        %v418 = vpop.xlane.xlu0 %417
        %v419 = vsel %vm403, %v415, 0.0
        %420 = vadd.xlane.f32.xlu0 %v419
        %v421 = vpop.xlane.xlu0 %420
        %v422 = vsel %vm403, %v308, 0.0
        %423 = vadd.xlane.f32.xlu0 %v422
        %v424 = vpop.xlane.xlu0 %423
        %v425 = vsel %vm403, %v309, 0.0
        %426 = vadd.xlane.f32.xlu0 %v425
        %v427 = vpop.xlane.xlu0 %426
        %v428 = vrcp.pop %v418
        %v429 = vmul.f32 %v424, %v428
        %v430 = vrcp.pop %v421
        %v431 = vmul.f32 %v427, %v430
        %v432 = vmul.f32 %v413, %v429
        %v433 = vmul.f32 %v415, %v431
        %v435 = vsel %vm403, %v432, 0
        %437 = vmatprep.subr.mxu0 0.0
        %438 = vmatpush1.msra.mxu0 0.0
        %439 = vmatprep.subr.mxu0 0.0
        %440 = vmatpush1.msra.mxu0 0.0
        %441 = vmatprep.subr.mxu0 0.0
        %442 = vmatpush1.msra.mxu0 0.0
        %443 = vmatprep.subr.mxu0 0.0
        %444 = vmatpush1.msra.mxu0 0.0
        %445 = vmatprep.subr.mxu0 0.0
        %446 = vmatpush1.msra.mxu0 0.0
        %447 = vmatprep.subr.mxu0 0.0
        %448 = vmatpush1.msra.mxu0 0.0
        %449 = vmatprep.subr.mxu0 0.0
        %450 = vmatpush1.msra.mxu0 0.0
        %451 = vmatprep.subr.mxu0 0.0
        %452 = vmatpush1.msra.mxu0 0.0
        %453 = vmatprep.subr.mxu0 0.0
        %454 = vmatpush1.msra.mxu0 0.0
        %455 = vmatprep.subr.mxu0 0.0
        %456 = vmatpush1.msra.mxu0 0.0
        %457 = vmatprep.subr.mxu0 0.0
        %458 = vmatpush1.msra.mxu0 0.0
        %459 = vmatprep.subr.mxu0 0.0
        %460 = vmatpush1.msra.mxu0 0.0
        %461 = vmatprep.subr.mxu0 0.0
        %462 = vmatpush1.msra.mxu0 0.0
        %463 = vmatprep.subr.mxu0 0.0
        %464 = vmatpush1.msra.mxu0 0.0
        %465 = vmatprep.subr.mxu0 0.0
        %466 = vmatpush1.msra.mxu0 %v301
        %467 = vmatprep.subr.mxu0 0.0
        %468 = vmatpush1.msra.mxu0 %v300
        %469 = vmatprep.subr.mxu0 0.0
        %470 = vmatpush2.msra.mxu0 0.0
        %471 = vmatprep.subr.mxu0 0.0
        %472 = vmatpush2.msra.mxu0 0.0
        %473 = vmatprep.subr.mxu0 0.0
        %474 = vmatpush2.msra.mxu0 0.0
        %475 = vmatprep.subr.mxu0 0.0
        %476 = vmatpush2.msra.mxu0 0.0
        %477 = vmatprep.subr.mxu0 0.0
        %478 = vmatpush2.msra.mxu0 0.0
        %479 = vmatprep.subr.mxu0 0.0
        %480 = vmatpush2.msra.mxu0 0.0
        %481 = vmatprep.subr.mxu0 0.0
        %482 = vmatpush2.msra.mxu0 0.0
        %483 = vmatprep.subr.mxu0 0.0
        %484 = vmatpush2.msra.mxu0 0.0
        %485 = vmatprep.subr.mxu0 0.0
        %486 = vmatpush2.msra.mxu0 0.0
        %487 = vmatprep.subr.mxu0 0.0
        %488 = vmatpush2.msra.mxu0 0.0
        %489 = vmatprep.subr.mxu0 0.0
        %490 = vmatpush2.msra.mxu0 0.0
        %491 = vmatprep.subr.mxu0 0.0
        %492 = vmatpush2.msra.mxu0 0.0
        %493 = vmatprep.subr.mxu0 0.0
        %494 = vmatpush2.msra.mxu0 0.0
        %495 = vmatprep.subr.mxu0 0.0
        %496 = vmatpush2.msra.mxu0 0.0
        %497 = vmatprep.subr.mxu0 0.0
        %498 = vmatpush2.msra.mxu0 0.0
        %499 = vmatprep.subr.mxu0 0.0
        %500 = vmatpush2.msra.mxu0 0.0
        %501 = vmatprep.mubr.f32.mxu0 0.0
        %502 = vmatmul.mubr.f32.gmra.mxu0 %v435
        %v503 = vpop.f32.mrf.mxu0
        %v504 = vadd.f32 0.0, %v503
        %v505 = vpop.f32.mrf.mxu0
        %506 = vdwg.mxu0
        %v508 = vsel %vm403, %v433, 0
        %510 = vmatprep.subr.mxu0 0.0
        %511 = vmatpush1.msra.mxu0 0.0
        %512 = vmatprep.subr.mxu0 0.0
        %513 = vmatpush1.msra.mxu0 0.0
        %514 = vmatprep.subr.mxu0 0.0
        %515 = vmatpush1.msra.mxu0 0.0
        %516 = vmatprep.subr.mxu0 0.0
        %517 = vmatpush1.msra.mxu0 0.0
        %518 = vmatprep.subr.mxu0 0.0
        %519 = vmatpush1.msra.mxu0 0.0
        %520 = vmatprep.subr.mxu0 0.0
        %521 = vmatpush1.msra.mxu0 0.0
        %522 = vmatprep.subr.mxu0 0.0
        %523 = vmatpush1.msra.mxu0 0.0
        %524 = vmatprep.subr.mxu0 0.0
        %525 = vmatpush1.msra.mxu0 0.0
        %526 = vmatprep.subr.mxu0 0.0
        %527 = vmatpush1.msra.mxu0 0.0
        %528 = vmatprep.subr.mxu0 0.0
        %529 = vmatpush1.msra.mxu0 0.0
        %530 = vmatprep.subr.mxu0 0.0
        %531 = vmatpush1.msra.mxu0 0.0
        %532 = vmatprep.subr.mxu0 0.0
        %533 = vmatpush1.msra.mxu0 0.0
        %534 = vmatprep.subr.mxu0 0.0
        %535 = vmatpush1.msra.mxu0 0.0
        %536 = vmatprep.subr.mxu0 0.0
        %537 = vmatpush1.msra.mxu0 0.0
        %538 = vmatprep.subr.mxu0 0.0
        %539 = vmatpush1.msra.mxu0 %v303
        %540 = vmatprep.subr.mxu0 0.0
        %541 = vmatpush1.msra.mxu0 %v302
        %542 = vmatprep.subr.mxu0 0.0
        %543 = vmatpush2.msra.mxu0 0.0
        %544 = vmatprep.subr.mxu0 0.0
        %545 = vmatpush2.msra.mxu0 0.0
        %546 = vmatprep.subr.mxu0 0.0
        %547 = vmatpush2.msra.mxu0 0.0
        %548 = vmatprep.subr.mxu0 0.0
        %549 = vmatpush2.msra.mxu0 0.0
        %550 = vmatprep.subr.mxu0 0.0
        %551 = vmatpush2.msra.mxu0 0.0
        %552 = vmatprep.subr.mxu0 0.0
        %553 = vmatpush2.msra.mxu0 0.0
        %554 = vmatprep.subr.mxu0 0.0
        %555 = vmatpush2.msra.mxu0 0.0
        %556 = vmatprep.subr.mxu0 0.0
        %557 = vmatpush2.msra.mxu0 0.0
        %558 = vmatprep.subr.mxu0 0.0
        %559 = vmatpush2.msra.mxu0 0.0
        %560 = vmatprep.subr.mxu0 0.0
        %561 = vmatpush2.msra.mxu0 0.0
        %562 = vmatprep.subr.mxu0 0.0
        %563 = vmatpush2.msra.mxu0 0.0
        %564 = vmatprep.subr.mxu0 0.0
        %565 = vmatpush2.msra.mxu0 0.0
        %566 = vmatprep.subr.mxu0 0.0
        %567 = vmatpush2.msra.mxu0 0.0
        %568 = vmatprep.subr.mxu0 0.0
        %569 = vmatpush2.msra.mxu0 0.0
        %570 = vmatprep.subr.mxu0 0.0
        %571 = vmatpush2.msra.mxu0 0.0
        %572 = vmatprep.subr.mxu0 0.0
        %573 = vmatpush2.msra.mxu0 0.0
        %574 = vmatprep.mubr.f32.mxu0 0.0
        %575 = vmatmul.mubr.f32.gmra.mxu0 %v508
        %v576 = vpop.f32.mrf.mxu0
        %v577 = vadd.f32 0.0, %v576
        %v578 = vpop.f32.mrf.mxu0
        %579 = vdwg.mxu0
        %580 = vst.msk [vmem:[%s293] sm:$0xff] %vm318, %v504
        %581 = vst.msk [vmem:[%s293 + $0x8] sm:$0xff] %vm318, %v577
        %s582 = sand.u32 %s131, 1
        %s583 = scalar_lea.sflag [#allocation4], %s582
        %s584 = sand.u32 %s131, 1
        %s585 = smul.addr %s584, 16
        %s586 = scalar_lea.vmem [#allocation8], %s585
        // Predicated region
        $region49: #{tpu_custom_call.1} parent=35 // pred_check
          %p587 = pneg %p141
        $region50: #{tpu_custom_call.1} parent=35 // pred_check_branch
          %589 = sbr.rel (%p587) target = $region52
        $region51: #{tpu_custom_call.1} parent=35 // pred_region
          %s590 = smul.u32 2, %s24
          %s592 = ssub.s32 256, 256
          %593 = vsyncadd %s583, %s592
          %s594 = smul.addr %s590, 128
          %s595 = scalar_lea.hbm %s4, %s594
          %s596 = sshll.u32 %s586, 4
          %s597 = int_to_ptr.vmem [resolvable:$true] %s596
          %602 = dma.vmem_to_hbm [thread:$0]  %s597, 256, %s595, %s583, 128, 128, 8
        $region52: #{tpu_custom_call.1} parent=35 // pred_fallthru
          _
      $region36: #{tpu_custom_call.1} parent=5 // pred_fallthru
        _
      %p603 = scmp.le.s32.totalorder 2, %s19
      // Predicated region
      $region53: #{tpu_custom_call.1} parent=5 // pred_check
        %p604 = pneg %p603
      $region54: #{tpu_custom_call.1} parent=5 // pred_check_branch
        %606 = sbr.rel (%p604) target = $region56
      $region55: #{tpu_custom_call.1} parent=5 // pred_region
        %s607 = ssub.s32 %s19, 2
        // Predicated region
        $region57: #{tpu_custom_call.1} parent=55 // pred_check
          %p608 = pneg %p147
        $region58: #{tpu_custom_call.1} parent=55 // pred_check_branch
          %610 = sbr.rel (%p608) target = $region60
        $region59: #{tpu_custom_call.1} parent=55 // pred_region
          %s611 = sand.u32 %s132, 1
          %s612 = scalar_lea.sflag [#allocation4], %s611
          %s613 = sand.u32 %s132, 1
          %s614 = smul.addr %s613, 16
          %s615 = scalar_lea.vmem [#allocation8], %s614
          %616 = dma.done %s612, 256
        $region60: #{tpu_custom_call.1} parent=55 // pred_fallthru
          _
      $region56: #{tpu_custom_call.1} parent=5 // pred_fallthru
        _
    $region6: #{tpu_custom_call.1} parent=1 // loop_footer
      %s23 = sadd.s32 1, %s19
    $region7: #{tpu_custom_call.1} parent=1 // loop_footer_branch
      %18 = sbr.rel target = $region3
    $region8: #{tpu_custom_call.1} parent=1 // loop_exit
      _
    %617 = vsyncpa [#allocation3], 1
    %s618 = scalar_lea.sflag [#allocation3], 1
    %619 = vsyncpa %s618, 1
    %620 = vsyncpa [#allocation6], 1
    %s621 = scalar_lea.sflag [#allocation6], 1
    %622 = vsyncpa %s621, 1
    %623 = vsyncpa [#allocation4], 1
    %s624 = scalar_lea.sflag [#allocation4], 1
    %625 = vsyncpa %s624, 1

</llo_original>
